<compile_context>
chip_gen: v6e
topology: v6e:2x2x1
jax: 0.10.0
libtpu: 0.0.40
codegen_flags: <defaults>
</compile_context>

<pallas_src>
import jax
import jax.numpy as jnp
from jax.experimental import pallas as pl
from jax.experimental.pallas import tpu as pltpu

PREV_DIM = 256   # self.encoder.fc.weight.shape[1]
EMB_DIM = 128    # EMB_DIM global in the reference code
PRED_DIM = 128   # pred_dim default
BN_EPS = 1e-5
C_IN = 3         # channels in 'img' mode
C_PAD = 8        # stem K padded to a full sublane group


def _full_spec(shape):
    # one grid step, block == full array
    return pl.BlockSpec(shape, lambda i: tuple(0 for _ in shape))


# ---------------------------------------------------------------------------
# Fused Pallas kernel: stem + projection head + predictor, both views at once
# ---------------------------------------------------------------------------
def siamese_fused_kernel(feats_ref,
                         ws_ref, bs_ref,
                         w1_ref, sh1_ref,
                         w2_ref, sh2_ref,
                         w3_ref, sh3_ref,
                         pw1_ref, psh1_ref,
                         pw2_ref, pb2_ref,
                         z_ref, p_ref):
    """All BN (eval mode) pre-folded into weights/shifts; Dropout = identity."""
    # Backbone stem stand-in: Linear C_PAD -> PREV_DIM.
    f = jnp.dot(feats_ref[...].astype(jnp.bfloat16), ws_ref[...],
                preferred_element_type=jnp.float32) + bs_ref[...]

    # Projection head (encoder.fc).
    h = jnp.dot(f.astype(jnp.bfloat16), w1_ref[...],
                preferred_element_type=jnp.float32)
    h = jnp.maximum(h + sh1_ref[...], 0.0)                     # BN1 + ReLU
    h = jnp.dot(h.astype(jnp.bfloat16), w2_ref[...],
                preferred_element_type=jnp.float32)
    h = jnp.maximum(h + sh2_ref[...], 0.0)                     # BN2 + ReLU
    z = jnp.dot(h.astype(jnp.bfloat16), w3_ref[...],
                preferred_element_type=jnp.float32) + sh3_ref[...]
    z_ref[...] = z                                             # bias+Dropout+BN3 folded

    # Predictor.
    q = jnp.dot(z.astype(jnp.bfloat16), pw1_ref[...],
                preferred_element_type=jnp.float32)
    q = jnp.maximum(q + psh1_ref[...], 0.0)                    # BN + ReLU
    p_ref[...] = jnp.dot(q.astype(jnp.bfloat16), pw2_ref[...],
                         preferred_element_type=jnp.float32) + pb2_ref[...]


def siamese_heads(feats, p):
    """feats: [N, C_PAD] (both views stacked).  Returns (z, p), each [N, EMB_DIM]."""
    N = feats.shape[0]
    args = (feats, p["ws"], p["bs"],
            p["w1"], p["sh1"], p["w2"], p["sh2"], p["w3"], p["sh3"],
            p["pw1"], p["psh1"], p["pw2"], p["pb2"])
    return pl.pallas_call(
        siamese_fused_kernel,
        out_shape=(jax.ShapeDtypeStruct((N, EMB_DIM), jnp.float32),
                   jax.ShapeDtypeStruct((N, EMB_DIM), jnp.float32)),
        grid=(1,),
        in_specs=[_full_spec(a.shape) for a in args],
        out_specs=(_full_spec((N, EMB_DIM)), _full_spec((N, EMB_DIM))),
        compiler_params=pltpu.CompilerParams(
            dimension_semantics=("arbitrary",)),
    )(*args)


# ---------------------------------------------------------------------------
# Glue (parameter setup with BN folding) in plain JAX
# ---------------------------------------------------------------------------
def _bn_fold(gamma, beta, mean, var):
    scale = gamma / jnp.sqrt(var + BN_EPS)
    shift = beta - mean * scale
    return scale, shift


def init_params(key):
    ks = list(jax.random.split(key, 20))

    def nrm(k, shape, scale=0.05):
        return (scale * jax.random.normal(k, shape)).astype(jnp.float32)

    def pos(k, shape):
        return jax.random.uniform(k, shape, minval=0.5, maxval=1.5).astype(jnp.float32)

    p = {}
    # backbone stand-in stem (TODO(synk): real base_encoder backbone is external)
    w_stem = nrm(ks[0], (C_IN, PREV_DIM))
    p["ws"] = jnp.pad(w_stem, ((0, C_PAD - C_IN), (0, 0))).astype(jnp.bfloat16)
    p["bs"] = nrm(ks[1], (PREV_DIM,))[None, :]

    # projection head (encoder.fc): BN scales folded into weight columns
    w1 = nrm(ks[2], (PREV_DIM, PREV_DIM))
    s1, sh1 = _bn_fold(pos(ks[3], (PREV_DIM,)), nrm(ks[4], (PREV_DIM,)),
                       nrm(ks[5], (PREV_DIM,)), pos(ks[6], (PREV_DIM,)))
    p["w1"] = (w1 * s1[None, :]).astype(jnp.bfloat16)
    p["sh1"] = sh1[None, :]

    w2 = nrm(ks[7], (PREV_DIM, PREV_DIM))
    s2, sh2 = _bn_fold(pos(ks[8], (PREV_DIM,)), nrm(ks[9], (PREV_DIM,)),
                       nrm(ks[10], (PREV_DIM,)), pos(ks[11], (PREV_DIM,)))
    p["w2"] = (w2 * s2[None, :]).astype(jnp.bfloat16)
    p["sh2"] = sh2[None, :]

    # Linear(+bias) -> Dropout(eval) -> BN(affine=False):
    #   (x@w3 + b3 - mean3) * s3  ==  x@(w3*s3) + (b3 - mean3)*s3
    w3 = nrm(ks[12], (PREV_DIM, EMB_DIM))
    b3 = nrm(ks[13], (EMB_DIM,))
    mean3 = nrm(ks[14], (EMB_DIM,))
    var3 = pos(ks[15], (EMB_DIM,))
    s3 = 1.0 / jnp.sqrt(var3 + BN_EPS)
    p["w3"] = (w3 * s3[None, :]).astype(jnp.bfloat16)
    p["sh3"] = ((b3 - mean3) * s3)[None, :]

    # predictor
    pw1 = nrm(ks[16], (EMB_DIM, PRED_DIM))
    ps1, psh1 = _bn_fold(pos(ks[17], (PRED_DIM,)), nrm(ks[18], (PRED_DIM,)),
                         jnp.zeros((PRED_DIM,), jnp.float32),
                         jnp.ones((PRED_DIM,), jnp.float32))
    p["pw1"] = (pw1 * ps1[None, :]).astype(jnp.bfloat16)
    p["psh1"] = psh1[None, :]
    p["pw2"] = nrm(ks[19], (PRED_DIM, EMB_DIM)).astype(jnp.bfloat16)
    p["pb2"] = jnp.zeros((1, EMB_DIM), jnp.float32)
    return p


@jax.jit
def siamese_forward(x1, x2, params):
    """Two-view path of Siamese.forward (rots_2 provided), eval semantics."""
    B = x1.shape[0]
    # TODO(synk): stand-in pooling for the external base_encoder backbone.
    feats1 = jnp.mean(x1, axis=(2, 3, 4))                      # [B, C]
    feats2 = jnp.mean(x2, axis=(2, 3, 4))                      # [B, C]
    feats = jnp.concatenate([feats1, feats2], axis=0)          # [2B, C]
    feats = jnp.pad(feats, ((0, 0), (0, C_PAD - C_IN)))        # zero-pad K to 8
    z, p = siamese_heads(feats, params)                        # single fused kernel
    z1, z2 = z[:B], z[B:]
    p1, p2 = p[:B], p[B:]
    return p1, p2, jax.lax.stop_gradient(z1), jax.lax.stop_gradient(z2)


if __name__ == "__main__":
    key = jax.random.PRNGKey(0)
    kp, kx1, kx2 = jax.random.split(key, 3)
    params = init_params(kp)

    # 'img' mode cubed views: [B, 3, n_patches, H, W]
    B, C, P, H, W = 8, 3, 4, 16, 16
    x1 = jax.random.normal(kx1, (B, C, P, H, W), dtype=jnp.float32)
    x2 = jax.random.normal(kx2, (B, C, P, H, W), dtype=jnp.float32)

    p1, p2, z1, z2 = siamese_forward(x1, x2, params)
    jax.block_until_ready((p1, p2, z1, z2))

    assert p1.shape == (B, EMB_DIM) and p2.shape == (B, EMB_DIM)
    assert z1.shape == (B, EMB_DIM) and z2.shape == (B, EMB_DIM)
    assert bool(jnp.all(jnp.isfinite(p1))) and bool(jnp.all(jnp.isfinite(p2)))
    print("KERNEL_OK")
</pallas_src>

<mosaic_0001>
module attributes {stable_mosaic.version = 11 : i64} {
  func.func @siamese_fused_kernel(%arg0: i32, %arg1: memref<16x8xf32, #tpu.memory_space<vmem>>, %arg2: memref<8x256xbf16, #tpu.memory_space<vmem>>, %arg3: memref<1x256xf32, #tpu.memory_space<vmem>>, %arg4: memref<256x256xbf16, #tpu.memory_space<vmem>>, %arg5: memref<1x256xf32, #tpu.memory_space<vmem>>, %arg6: memref<256x256xbf16, #tpu.memory_space<vmem>>, %arg7: memref<1x256xf32, #tpu.memory_space<vmem>>, %arg8: memref<256x128xbf16, #tpu.memory_space<vmem>>, %arg9: memref<1x128xf32, #tpu.memory_space<vmem>>, %arg10: memref<128x128xbf16, #tpu.memory_space<vmem>>, %arg11: memref<1x128xf32, #tpu.memory_space<vmem>>, %arg12: memref<128x128xbf16, #tpu.memory_space<vmem>>, %arg13: memref<1x128xf32, #tpu.memory_space<vmem>>, %arg14: memref<16x128xf32, #tpu.memory_space<vmem>>, %arg15: memref<16x128xf32, #tpu.memory_space<vmem>>) attributes {dimension_semantics = [#tpu.dimension_semantics<arbitrary>], iteration_bounds = array<i64: 1>, scalar_prefetch = 0 : i64, scratch_operands = 0 : i64, tpu.core_type = #tpu.core_type<tc>, window_params = [{pipeline_mode = #tpu.pipeline_mode<synchronous>, transform_indices = @transform_0, window_bounds = array<i64: 16, 8>}, {pipeline_mode = #tpu.pipeline_mode<synchronous>, transform_indices = @transform_1, window_bounds = array<i64: 8, 256>}, {pipeline_mode = #tpu.pipeline_mode<synchronous>, transform_indices = @transform_2, window_bounds = array<i64: 1, 256>}, {pipeline_mode = #tpu.pipeline_mode<synchronous>, transform_indices = @transform_3, window_bounds = array<i64: 256, 256>}, {pipeline_mode = #tpu.pipeline_mode<synchronous>, transform_indices = @transform_4, window_bounds = array<i64: 1, 256>}, {pipeline_mode = #tpu.pipeline_mode<synchronous>, transform_indices = @transform_5, window_bounds = array<i64: 256, 256>}, {pipeline_mode = #tpu.pipeline_mode<synchronous>, transform_indices = @transform_6, window_bounds = array<i64: 1, 256>}, {pipeline_mode = #tpu.pipeline_mode<synchronous>, transform_indices = @transform_7, window_bounds = array<i64: 256, 128>}, {pipeline_mode = #tpu.pipeline_mode<synchronous>, transform_indices = @transform_8, window_bounds = array<i64: 1, 128>}, {pipeline_mode = #tpu.pipeline_mode<synchronous>, transform_indices = @transform_9, window_bounds = array<i64: 128, 128>}, {pipeline_mode = #tpu.pipeline_mode<synchronous>, transform_indices = @transform_10, window_bounds = array<i64: 1, 128>}, {pipeline_mode = #tpu.pipeline_mode<synchronous>, transform_indices = @transform_11, window_bounds = array<i64: 128, 128>}, {pipeline_mode = #tpu.pipeline_mode<synchronous>, transform_indices = @transform_12, window_bounds = array<i64: 1, 128>}, {pipeline_mode = #tpu.pipeline_mode<synchronous>, transform_indices = @transform_13, window_bounds = array<i64: 16, 128>}, {pipeline_mode = #tpu.pipeline_mode<synchronous>, transform_indices = @transform_14, window_bounds = array<i64: 16, 128>}]} {
    %c0 = arith.constant 0 : index
    %c0_0 = arith.constant 0 : index
    %0 = vector.load %arg1[%c0, %c0_0] : memref<16x8xf32, #tpu.memory_space<vmem>>, vector<16x8xf32>
    %1 = arith.truncf %0 : vector<16x8xf32> to vector<16x8xbf16>
    %c0_1 = arith.constant 0 : index
    %c0_2 = arith.constant 0 : index
    %2 = vector.load %arg2[%c0_1, %c0_2] : memref<8x256xbf16, #tpu.memory_space<vmem>>, vector<8x256xbf16>
    %cst = arith.constant dense<0.000000e+00> : vector<16x256xf32>
    %3 = tpu.matmul %1, %2, %cst {dimension_numbers = #tpu.dot_dimension_numbers<[1], [0], [0], [1], [0, 0, 1, 1], [], []>} : vector<16x8xbf16>, vector<8x256xbf16>, vector<16x256xf32> -> vector<16x256xf32>
    %c0_3 = arith.constant 0 : index
    %c0_4 = arith.constant 0 : index
    %4 = vector.load %arg3[%c0_3, %c0_4] : memref<1x256xf32, #tpu.memory_space<vmem>>, vector<1x256xf32>
    %5 = vector.broadcast %4 : vector<1x256xf32> to vector<16x256xf32>
    %6 = arith.addf %3, %5 : vector<16x256xf32>
    %7 = arith.truncf %6 : vector<16x256xf32> to vector<16x256xbf16>
    %c0_5 = arith.constant 0 : index
    %c0_6 = arith.constant 0 : index
    %8 = vector.load %arg4[%c0_5, %c0_6] : memref<256x256xbf16, #tpu.memory_space<vmem>>, vector<256x256xbf16>
    %cst_7 = arith.constant dense<0.000000e+00> : vector<16x256xf32>
    %9 = tpu.matmul %7, %8, %cst_7 {dimension_numbers = #tpu.dot_dimension_numbers<[1], [0], [0], [1], [0, 0, 1, 1], [], []>} : vector<16x256xbf16>, vector<256x256xbf16>, vector<16x256xf32> -> vector<16x256xf32>
    %c0_8 = arith.constant 0 : index
    %c0_9 = arith.constant 0 : index
    %10 = vector.load %arg5[%c0_8, %c0_9] : memref<1x256xf32, #tpu.memory_space<vmem>>, vector<1x256xf32>
    %11 = vector.broadcast %10 : vector<1x256xf32> to vector<16x256xf32>
    %12 = arith.addf %9, %11 : vector<16x256xf32>
    %cst_10 = arith.constant 0.000000e+00 : f32
    %13 = vector.broadcast %cst_10 : f32 to vector<16x256xf32>
    %14 = arith.maximumf %12, %13 : vector<16x256xf32>
    %15 = arith.truncf %14 : vector<16x256xf32> to vector<16x256xbf16>
    %c0_11 = arith.constant 0 : index
    %c0_12 = arith.constant 0 : index
    %16 = vector.load %arg6[%c0_11, %c0_12] : memref<256x256xbf16, #tpu.memory_space<vmem>>, vector<256x256xbf16>
    %cst_13 = arith.constant dense<0.000000e+00> : vector<16x256xf32>
    %17 = tpu.matmul %15, %16, %cst_13 {dimension_numbers = #tpu.dot_dimension_numbers<[1], [0], [0], [1], [0, 0, 1, 1], [], []>} : vector<16x256xbf16>, vector<256x256xbf16>, vector<16x256xf32> -> vector<16x256xf32>
    %c0_14 = arith.constant 0 : index
    %c0_15 = arith.constant 0 : index
    %18 = vector.load %arg7[%c0_14, %c0_15] : memref<1x256xf32, #tpu.memory_space<vmem>>, vector<1x256xf32>
    %19 = vector.broadcast %18 : vector<1x256xf32> to vector<16x256xf32>
    %20 = arith.addf %17, %19 : vector<16x256xf32>
    %cst_16 = arith.constant 0.000000e+00 : f32
    %21 = vector.broadcast %cst_16 : f32 to vector<16x256xf32>
    %22 = arith.maximumf %20, %21 : vector<16x256xf32>
    %23 = arith.truncf %22 : vector<16x256xf32> to vector<16x256xbf16>
    %c0_17 = arith.constant 0 : index
    %c0_18 = arith.constant 0 : index
    %24 = vector.load %arg8[%c0_17, %c0_18] : memref<256x128xbf16, #tpu.memory_space<vmem>>, vector<256x128xbf16>
    %cst_19 = arith.constant dense<0.000000e+00> : vector<16x128xf32>
    %25 = tpu.matmul %23, %24, %cst_19 {dimension_numbers = #tpu.dot_dimension_numbers<[1], [0], [0], [1], [0, 0, 1, 1], [], []>} : vector<16x256xbf16>, vector<256x128xbf16>, vector<16x128xf32> -> vector<16x128xf32>
    %c0_20 = arith.constant 0 : index
    %c0_21 = arith.constant 0 : index
    %26 = vector.load %arg9[%c0_20, %c0_21] : memref<1x128xf32, #tpu.memory_space<vmem>>, vector<1x128xf32>
    %27 = vector.broadcast %26 : vector<1x128xf32> to vector<16x128xf32>
    %28 = arith.addf %25, %27 : vector<16x128xf32>
    %c0_22 = arith.constant 0 : index
    %c0_23 = arith.constant 0 : index
    %29 = vector.load %arg14[%c0_22, %c0_23] : memref<16x128xf32, #tpu.memory_space<vmem>>, vector<16x128xf32>
    tpu.vector_store %arg14[%c0_22, %c0_23], %28 {strides = array<i32>} : memref<16x128xf32, #tpu.memory_space<vmem>>, vector<16x128xf32>,
    %30 = arith.truncf %28 : vector<16x128xf32> to vector<16x128xbf16>
    %c0_24 = arith.constant 0 : index
    %c0_25 = arith.constant 0 : index
    %31 = vector.load %arg10[%c0_24, %c0_25] : memref<128x128xbf16, #tpu.memory_space<vmem>>, vector<128x128xbf16>
    %cst_26 = arith.constant dense<0.000000e+00> : vector<16x128xf32>
    %32 = tpu.matmul %30, %31, %cst_26 {dimension_numbers = #tpu.dot_dimension_numbers<[1], [0], [0], [1], [0, 0, 1, 1], [], []>} : vector<16x128xbf16>, vector<128x128xbf16>, vector<16x128xf32> -> vector<16x128xf32>
    %c0_27 = arith.constant 0 : index
    %c0_28 = arith.constant 0 : index
    %33 = vector.load %arg11[%c0_27, %c0_28] : memref<1x128xf32, #tpu.memory_space<vmem>>, vector<1x128xf32>
    %34 = vector.broadcast %33 : vector<1x128xf32> to vector<16x128xf32>
    %35 = arith.addf %32, %34 : vector<16x128xf32>
    %cst_29 = arith.constant 0.000000e+00 : f32
    %36 = vector.broadcast %cst_29 : f32 to vector<16x128xf32>
    %37 = arith.maximumf %35, %36 : vector<16x128xf32>
    %38 = arith.truncf %37 : vector<16x128xf32> to vector<16x128xbf16>
    %c0_30 = arith.constant 0 : index
    %c0_31 = arith.constant 0 : index
    %39 = vector.load %arg12[%c0_30, %c0_31] : memref<128x128xbf16, #tpu.memory_space<vmem>>, vector<128x128xbf16>
    %cst_32 = arith.constant dense<0.000000e+00> : vector<16x128xf32>
    %40 = tpu.matmul %38, %39, %cst_32 {dimension_numbers = #tpu.dot_dimension_numbers<[1], [0], [0], [1], [0, 0, 1, 1], [], []>} : vector<16x128xbf16>, vector<128x128xbf16>, vector<16x128xf32> -> vector<16x128xf32>
    %c0_33 = arith.constant 0 : index
    %c0_34 = arith.constant 0 : index
    %41 = vector.load %arg13[%c0_33, %c0_34] : memref<1x128xf32, #tpu.memory_space<vmem>>, vector<1x128xf32>
    %42 = vector.broadcast %41 : vector<1x128xf32> to vector<16x128xf32>
    %43 = arith.addf %40, %42 : vector<16x128xf32>
    %c0_35 = arith.constant 0 : index
    %c0_36 = arith.constant 0 : index
    %44 = vector.load %arg15[%c0_35, %c0_36] : memref<16x128xf32, #tpu.memory_space<vmem>>, vector<16x128xf32>
    tpu.vector_store %arg15[%c0_35, %c0_36], %43 {strides = array<i32>} : memref<16x128xf32, #tpu.memory_space<vmem>>, vector<16x128xf32>,
    return
  }
  func.func @transform_0(%arg0: i32) -> (i32, i32) {
    %c0_i32 = arith.constant 0 : i32
    %c0_i32_0 = arith.constant 0 : i32
    %c0_i32_1 = arith.constant 0 : i32
    return %c0_i32, %c0_i32_0 : i32, i32
  }
  func.func @transform_1(%arg0: i32) -> (i32, i32) {
    %c0_i32 = arith.constant 0 : i32
    %c0_i32_0 = arith.constant 0 : i32
    %c0_i32_1 = arith.constant 0 : i32
    return %c0_i32, %c0_i32_0 : i32, i32
  }
  func.func @transform_2(%arg0: i32) -> (i32, i32) {
    %c0_i32 = arith.constant 0 : i32
    %c0_i32_0 = arith.constant 0 : i32
    %c0_i32_1 = arith.constant 0 : i32
    return %c0_i32, %c0_i32_0 : i32, i32
  }
  func.func @transform_3(%arg0: i32) -> (i32, i32) {
    %c0_i32 = arith.constant 0 : i32
    %c0_i32_0 = arith.constant 0 : i32
    %c0_i32_1 = arith.constant 0 : i32
    return %c0_i32, %c0_i32_0 : i32, i32
  }
  func.func @transform_4(%arg0: i32) -> (i32, i32) {
    %c0_i32 = arith.constant 0 : i32
    %c0_i32_0 = arith.constant 0 : i32
    %c0_i32_1 = arith.constant 0 : i32
    return %c0_i32, %c0_i32_0 : i32, i32
  }
  func.func @transform_5(%arg0: i32) -> (i32, i32) {
    %c0_i32 = arith.constant 0 : i32
    %c0_i32_0 = arith.constant 0 : i32
    %c0_i32_1 = arith.constant 0 : i32
    return %c0_i32, %c0_i32_0 : i32, i32
  }
  func.func @transform_6(%arg0: i32) -> (i32, i32) {
    %c0_i32 = arith.constant 0 : i32
    %c0_i32_0 = arith.constant 0 : i32
    %c0_i32_1 = arith.constant 0 : i32
    return %c0_i32, %c0_i32_0 : i32, i32
  }
  func.func @transform_7(%arg0: i32) -> (i32, i32) {
    %c0_i32 = arith.constant 0 : i32
    %c0_i32_0 = arith.constant 0 : i32
    %c0_i32_1 = arith.constant 0 : i32
    return %c0_i32, %c0_i32_0 : i32, i32
  }
  func.func @transform_8(%arg0: i32) -> (i32, i32) {
    %c0_i32 = arith.constant 0 : i32
    %c0_i32_0 = arith.constant 0 : i32
    %c0_i32_1 = arith.constant 0 : i32
    return %c0_i32, %c0_i32_0 : i32, i32
  }
  func.func @transform_9(%arg0: i32) -> (i32, i32) {
    %c0_i32 = arith.constant 0 : i32
    %c0_i32_0 = arith.constant 0 : i32
    %c0_i32_1 = arith.constant 0 : i32
    return %c0_i32, %c0_i32_0 : i32, i32
  }
  func.func @transform_10(%arg0: i32) -> (i32, i32) {
    %c0_i32 = arith.constant 0 : i32
    %c0_i32_0 = arith.constant 0 : i32
    %c0_i32_1 = arith.constant 0 : i32
    return %c0_i32, %c0_i32_0 : i32, i32
  }
  func.func @transform_11(%arg0: i32) -> (i32, i32) {
    %c0_i32 = arith.constant 0 : i32
    %c0_i32_0 = arith.constant 0 : i32
    %c0_i32_1 = arith.constant 0 : i32
    return %c0_i32, %c0_i32_0 : i32, i32
  }
  func.func @transform_12(%arg0: i32) -> (i32, i32) {
    %c0_i32 = arith.constant 0 : i32
    %c0_i32_0 = arith.constant 0 : i32
    %c0_i32_1 = arith.constant 0 : i32
    return %c0_i32, %c0_i32_0 : i32, i32
  }
  func.func @transform_13(%arg0: i32) -> (i32, i32) {
    %c0_i32 = arith.constant 0 : i32
    %c0_i32_0 = arith.constant 0 : i32
    %c0_i32_1 = arith.constant 0 : i32
    return %c0_i32, %c0_i32_0 : i32, i32
  }
  func.func @transform_14(%arg0: i32) -> (i32, i32) {
    %c0_i32 = arith.constant 0 : i32
    %c0_i32_0 = arith.constant 0 : i32
    %c0_i32_1 = arith.constant 0 : i32
    return %c0_i32, %c0_i32_0 : i32, i32
  }
}

</mosaic_0001>

<llo_original>
// kernel: siamese_forward.1
$region0: #{siamese_forward.1}
  #allocation0 [shape = 'u32[]', space=smem, size = 0x4, offset = 0x4, fixed_abs, tag = 'smem constant byte address 0x4 - core index']
  #allocation1 [shape = 'u32[144,128]{1,0:T(1,128)}', space=vmem, size = 0x12000, scoped, tag = 'internal scratch']
  %s0 = inlined_call_operand.vmem [shape: f32[16,8], index: 0, kind: input, shape index: {}]
  %s1 = inlined_call_operand.vmem [shape: bf16[8,256], index: 1, kind: input, shape index: {}]
  %s2 = inlined_call_operand.vmem [shape: f32[1,256], index: 2, kind: input, shape index: {}]
  %s3 = inlined_call_operand.vmem [shape: bf16[256,256], index: 3, kind: input, shape index: {}]
  %s4 = inlined_call_operand.vmem [shape: f32[1,256], index: 4, kind: input, shape index: {}]
  %s5 = inlined_call_operand.vmem [shape: bf16[256,256], index: 5, kind: input, shape index: {}]
  %s6 = inlined_call_operand.vmem [shape: f32[1,256], index: 6, kind: input, shape index: {}]
  %s7 = inlined_call_operand.vmem [shape: bf16[256,128], index: 7, kind: input, shape index: {}]
  %s8 = inlined_call_operand.vmem [shape: f32[1,128], index: 8, kind: input, shape index: {}]
  %s9 = inlined_call_operand.vmem [shape: bf16[128,128], index: 9, kind: input, shape index: {}]
  %s10 = inlined_call_operand.vmem [shape: f32[1,128], index: 10, kind: input, shape index: {}]
  %s11 = inlined_call_operand.vmem [shape: bf16[128,128], index: 11, kind: input, shape index: {}]
  %s12 = inlined_call_operand.vmem [shape: f32[1,128], index: 12, kind: input, shape index: {}]
  %s13 = inlined_call_operand.vmem [shape: f32[16,128], index: 13, kind: output, shape index: {0}]
  %s14 = inlined_call_operand.vmem [shape: f32[16,128], index: 14, kind: output, shape index: {1}]
  %15 = xla_tuple %s13, %s14
  %s16 = sld [smem:[#allocation0]]
  $region70: #{siamese_forward.1} parent=0
    _
  %s18 = ssub.s32 1, %s16
  %s19 = scalar_select 0, %s18, %s16
  // Predicated region
  $region2: #{siamese_forward.1} parent=0 // pred_check
    _
  $region3: #{siamese_forward.1} parent=0 // pred_check_branch
    %21 = sbr.rel (0) target = $region5
  $region4: #{siamese_forward.1} parent=0 // pred_region
    _
  $region5: #{siamese_forward.1} parent=0 // pred_fallthru
    _
  // Predicated region
  $region6: #{siamese_forward.1} parent=0 // pred_check
    _
  $region7: #{siamese_forward.1} parent=0 // pred_check_branch
    %23 = sbr.rel (0) target = $region9
  $region8: #{siamese_forward.1} parent=0 // pred_region
    _
  $region9: #{siamese_forward.1} parent=0 // pred_fallthru
    _
  // Predicated region
  $region10: #{siamese_forward.1} parent=0 // pred_check
    _
  $region11: #{siamese_forward.1} parent=0 // pred_check_branch
    %25 = sbr.rel (0) target = $region13
  $region12: #{siamese_forward.1} parent=0 // pred_region
    _
  $region13: #{siamese_forward.1} parent=0 // pred_fallthru
    _
  // Predicated region
  $region14: #{siamese_forward.1} parent=0 // pred_check
    _
  $region15: #{siamese_forward.1} parent=0 // pred_check_branch
    %27 = sbr.rel (0) target = $region17
  $region16: #{siamese_forward.1} parent=0 // pred_region
    _
  $region17: #{siamese_forward.1} parent=0 // pred_fallthru
    _
  // Predicated region
  $region18: #{siamese_forward.1} parent=0 // pred_check
    _
  $region19: #{siamese_forward.1} parent=0 // pred_check_branch
    %29 = sbr.rel (0) target = $region21
  $region20: #{siamese_forward.1} parent=0 // pred_region
    _
  $region21: #{siamese_forward.1} parent=0 // pred_fallthru
    _
  // Predicated region
  $region22: #{siamese_forward.1} parent=0 // pred_check
    _
  $region23: #{siamese_forward.1} parent=0 // pred_check_branch
    %31 = sbr.rel (0) target = $region25
  $region24: #{siamese_forward.1} parent=0 // pred_region
    _
  $region25: #{siamese_forward.1} parent=0 // pred_fallthru
    _
  // Predicated region
  $region26: #{siamese_forward.1} parent=0 // pred_check
    _
  $region27: #{siamese_forward.1} parent=0 // pred_check_branch
    %33 = sbr.rel (0) target = $region29
  $region28: #{siamese_forward.1} parent=0 // pred_region
    _
  $region29: #{siamese_forward.1} parent=0 // pred_fallthru
    _
  // Predicated region
  $region30: #{siamese_forward.1} parent=0 // pred_check
    _
  $region31: #{siamese_forward.1} parent=0 // pred_check_branch
    %35 = sbr.rel (0) target = $region33
  $region32: #{siamese_forward.1} parent=0 // pred_region
    _
  $region33: #{siamese_forward.1} parent=0 // pred_fallthru
    _
  // Predicated region
  $region34: #{siamese_forward.1} parent=0 // pred_check
    _
  $region35: #{siamese_forward.1} parent=0 // pred_check_branch
    %37 = sbr.rel (0) target = $region37
  $region36: #{siamese_forward.1} parent=0 // pred_region
    _
  $region37: #{siamese_forward.1} parent=0 // pred_fallthru
    _
  // Predicated region
  $region38: #{siamese_forward.1} parent=0 // pred_check
    _
  $region39: #{siamese_forward.1} parent=0 // pred_check_branch
    %39 = sbr.rel (0) target = $region41
  $region40: #{siamese_forward.1} parent=0 // pred_region
    _
  $region41: #{siamese_forward.1} parent=0 // pred_fallthru
    _
  // Predicated region
  $region42: #{siamese_forward.1} parent=0 // pred_check
    _
  $region43: #{siamese_forward.1} parent=0 // pred_check_branch
    %41 = sbr.rel (0) target = $region45
  $region44: #{siamese_forward.1} parent=0 // pred_region
    _
  $region45: #{siamese_forward.1} parent=0 // pred_fallthru
    _
  // Predicated region
  $region46: #{siamese_forward.1} parent=0 // pred_check
    _
  $region47: #{siamese_forward.1} parent=0 // pred_check_branch
    %43 = sbr.rel (0) target = $region49
  $region48: #{siamese_forward.1} parent=0 // pred_region
    _
  $region49: #{siamese_forward.1} parent=0 // pred_fallthru
    _
  // Predicated region
  $region50: #{siamese_forward.1} parent=0 // pred_check
    _
  $region51: #{siamese_forward.1} parent=0 // pred_check_branch
    %45 = sbr.rel (0) target = $region53
  $region52: #{siamese_forward.1} parent=0 // pred_region
    _
  $region53: #{siamese_forward.1} parent=0 // pred_fallthru
    _
  %v47 = vld [vmem:[%s0] sm:$0xff]
  %v48 = vld [vmem:[%s0 + $0x8] sm:$0xff]
  %v49 = vpack.c.bf16 %v48, %v47
  %v50 = vld [vmem:[%s1] sm:$0xff]
  %v51 = vld [vmem:[%s2] sm:$0x3]
  %v53 = vlaneseq
  %v54 = vshrl.u32 %v53, 7
  %v55 = vsub.s32 0, %v54
  %v56 = vrot.slane %v51, %v55
  %v57 = vlaneseq
  %v58 = vshrl.u32 %v57, 7
  %v59 = vsub.s32 1, %v58
  %v60 = vrot.slane %v51, %v59
  %v64 = vunpack.c.l.b16 %v50
  %v65 = vunpack.c.h.b16 %v50
  %v66 = vpack.c.b16 %v64, %v64
  %v67 = vpack.c.b16 %v65, %v65
  %vm68 = vcmask 64512
  %v70 = vsel %vm68, %v49, 0
  %vm72 = vcmask 1043456
  %v74 = vsel %vm72, %v66, 0
  %v77 = vsel %vm72, %v67, 0
  %79 = vmatprep.subr.bf16.mxu0 0
  %80 = vmatpush1.bf16.msra.mxu0 0
  %81 = vmatprep.subr.bf16.mxu0 0
  %82 = vmatpush1.bf16.msra.mxu0 0
  %83 = vmatprep.subr.bf16.mxu0 0
  %84 = vmatpush1.bf16.msra.mxu0 0
  %85 = vmatprep.subr.bf16.mxu0 0
  %86 = vmatpush1.bf16.msra.mxu0 0
  %87 = vmatprep.subr.bf16.mxu0 0
  %88 = vmatpush1.bf16.msra.mxu0 0
  %89 = vmatprep.subr.bf16.mxu0 0
  %90 = vmatpush1.bf16.msra.mxu0 0
  %91 = vmatprep.subr.bf16.mxu0 0
  %92 = vmatpush1.bf16.msra.mxu0 0
  %93 = vmatprep.subr.bf16.mxu0 %v77
  %94 = vmatpush1.bf16.msra.mxu0 %v74
  %95 = vmatprep.subr.bf16.mxu0 0
  %96 = vmatpush2.bf16.msra.mxu0 0
  %97 = vmatprep.subr.bf16.mxu0 0
  %98 = vmatpush2.bf16.msra.mxu0 0
  %99 = vmatprep.subr.bf16.mxu0 0
  %100 = vmatpush2.bf16.msra.mxu0 0
  %101 = vmatprep.subr.bf16.mxu0 0
  %102 = vmatpush2.bf16.msra.mxu0 0
  %103 = vmatprep.subr.bf16.mxu0 0
  %104 = vmatpush2.bf16.msra.mxu0 0
  %105 = vmatprep.subr.bf16.mxu0 0
  %106 = vmatpush2.bf16.msra.mxu0 0
  %107 = vmatprep.subr.bf16.mxu0 0
  %108 = vmatpush2.bf16.msra.mxu0 0
  %109 = vmatprep.subr.bf16.mxu0 0
  %110 = vmatpush2.bf16.msra.mxu0 0
  %111 = vmatprep.mubr.bf16.mxu0 0
  %112 = vmatmul.mubr.bf16.gmra.mxu0 %v70
  %v113 = vpop.f32.mrf.mxu0
  %v114 = vadd.f32 %v56, %v113
  %v115 = vpop.f32.mrf.mxu0
  %v116 = vadd.f32 %v60, %v115
  %v117 = vpop.f32.mrf.mxu0
  %v118 = vadd.f32 %v56, %v117
  %v119 = vpop.f32.mrf.mxu0
  %v120 = vadd.f32 %v60, %v119
  %121 = vdwg.mxu0
  %v122 = vpack.c.bf16 %v118, %v114
  %v123 = vpack.c.bf16 %v120, %v116
  %v124 = vld [vmem:[%s3] sm:$0xff]
  %v125 = vld [vmem:[%s3 + $0x8] sm:$0xff]
  %v126 = vld [vmem:[%s3 + $0x10] sm:$0xff]
  %v127 = vld [vmem:[%s3 + $0x18] sm:$0xff]
  %v128 = vld [vmem:[%s3 + $0x20] sm:$0xff]
  %v129 = vld [vmem:[%s3 + $0x28] sm:$0xff]
  %v130 = vld [vmem:[%s3 + $0x30] sm:$0xff]
  %v131 = vld [vmem:[%s3 + $0x38] sm:$0xff]
  %v132 = vld [vmem:[%s3 + $0x40] sm:$0xff]
  %v133 = vld [vmem:[%s3 + $0x48] sm:$0xff]
  %v134 = vld [vmem:[%s3 + $0x50] sm:$0xff]
  %v135 = vld [vmem:[%s3 + $0x58] sm:$0xff]
  %v136 = vld [vmem:[%s3 + $0x60] sm:$0xff]
  %v137 = vld [vmem:[%s3 + $0x68] sm:$0xff]
  %v138 = vld [vmem:[%s3 + $0x70] sm:$0xff]
  %v139 = vld [vmem:[%s3 + $0x78] sm:$0xff]
  %v140 = vld [vmem:[%s3 + $0x80] sm:$0xff]
  %v141 = vld [vmem:[%s3 + $0x88] sm:$0xff]
  %v142 = vld [vmem:[%s3 + $0x90] sm:$0xff]
  %v143 = vld [vmem:[%s3 + $0x98] sm:$0xff]
  %v144 = vld [vmem:[%s3 + $0xa0] sm:$0xff]
  %v145 = vld [vmem:[%s3 + $0xa8] sm:$0xff]
  %v146 = vld [vmem:[%s3 + $0xb0] sm:$0xff]
  %v147 = vld [vmem:[%s3 + $0xb8] sm:$0xff]
  %v148 = vld [vmem:[%s3 + $0xc0] sm:$0xff]
  %v149 = vld [vmem:[%s3 + $0xc8] sm:$0xff]
  %v150 = vld [vmem:[%s3 + $0xd0] sm:$0xff]
  %v151 = vld [vmem:[%s3 + $0xd8] sm:$0xff]
  %v152 = vld [vmem:[%s3 + $0xe0] sm:$0xff]
  %v153 = vld [vmem:[%s3 + $0xe8] sm:$0xff]
  %v154 = vld [vmem:[%s3 + $0xf0] sm:$0xff]
  %v155 = vld [vmem:[%s3 + $0xf8] sm:$0xff]
  %v156 = vld [vmem:[%s4] sm:$0x3]
  %v158 = vlaneseq
  %v159 = vshrl.u32 %v158, 7
  %v160 = vsub.s32 0, %v159
  %v161 = vrot.slane %v156, %v160
  %v162 = vlaneseq
  %v163 = vshrl.u32 %v162, 7
  %v164 = vsub.s32 1, %v163
  %v165 = vrot.slane %v156, %v164
  %v200 = vunpack.c.l.b16 %v124
  %v201 = vunpack.c.h.b16 %v124
  %v202 = vunpack.c.l.b16 %v125
  %v203 = vunpack.c.h.b16 %v125
  %v204 = vunpack.c.l.b16 %v126
  %v205 = vunpack.c.h.b16 %v126
  %v206 = vunpack.c.l.b16 %v127
  %v207 = vunpack.c.h.b16 %v127
  %v208 = vunpack.c.l.b16 %v128
  %v209 = vunpack.c.h.b16 %v128
  %v210 = vunpack.c.l.b16 %v129
  %v211 = vunpack.c.h.b16 %v129
  %v212 = vunpack.c.l.b16 %v130
  %v213 = vunpack.c.h.b16 %v130
  %v214 = vunpack.c.l.b16 %v131
  %v215 = vunpack.c.h.b16 %v131
  %v216 = vunpack.c.l.b16 %v132
  %v217 = vunpack.c.h.b16 %v132
  %v218 = vunpack.c.l.b16 %v133
  %v219 = vunpack.c.h.b16 %v133
  %v220 = vunpack.c.l.b16 %v134
  %v221 = vunpack.c.h.b16 %v134
  %v222 = vunpack.c.l.b16 %v135
  %v223 = vunpack.c.h.b16 %v135
  %v224 = vunpack.c.l.b16 %v136
  %v225 = vunpack.c.h.b16 %v136
  %v226 = vunpack.c.l.b16 %v137
  %v227 = vunpack.c.h.b16 %v137
  %v228 = vunpack.c.l.b16 %v138
  %v229 = vunpack.c.h.b16 %v138
  %v230 = vunpack.c.l.b16 %v139
  %v231 = vunpack.c.h.b16 %v139
  %v232 = vunpack.c.l.b16 %v140
  %v233 = vunpack.c.h.b16 %v140
  %v234 = vunpack.c.l.b16 %v141
  %v235 = vunpack.c.h.b16 %v141
  %v236 = vunpack.c.l.b16 %v142
  %v237 = vunpack.c.h.b16 %v142
  %v238 = vunpack.c.l.b16 %v143
  %v239 = vunpack.c.h.b16 %v143
  %v240 = vunpack.c.l.b16 %v144
  %v241 = vunpack.c.h.b16 %v144
  %v242 = vunpack.c.l.b16 %v145
  %v243 = vunpack.c.h.b16 %v145
  %v244 = vunpack.c.l.b16 %v146
  %v245 = vunpack.c.h.b16 %v146
  %v246 = vunpack.c.l.b16 %v147
  %v247 = vunpack.c.h.b16 %v147
  %v248 = vunpack.c.l.b16 %v148
  %v249 = vunpack.c.h.b16 %v148
  %v250 = vunpack.c.l.b16 %v149
  %v251 = vunpack.c.h.b16 %v149
  %v252 = vunpack.c.l.b16 %v150
  %v253 = vunpack.c.h.b16 %v150
  %v254 = vunpack.c.l.b16 %v151
  %v255 = vunpack.c.h.b16 %v151
  %v256 = vunpack.c.l.b16 %v152
  %v257 = vunpack.c.h.b16 %v152
  %v258 = vunpack.c.l.b16 %v153
  %v259 = vunpack.c.h.b16 %v153
  %v260 = vunpack.c.l.b16 %v154
  %v261 = vunpack.c.h.b16 %v154
  %v262 = vunpack.c.l.b16 %v155
  %v263 = vunpack.c.h.b16 %v155
  %v264 = vpack.c.b16 %v202, %v200
  %v265 = vpack.c.b16 %v203, %v201
  %v266 = vpack.c.b16 %v206, %v204
  %v267 = vpack.c.b16 %v207, %v205
  %v268 = vpack.c.b16 %v210, %v208
  %v269 = vpack.c.b16 %v211, %v209
  %v270 = vpack.c.b16 %v214, %v212
  %v271 = vpack.c.b16 %v215, %v213
  %v272 = vpack.c.b16 %v218, %v216
  %v273 = vpack.c.b16 %v219, %v217
  %v274 = vpack.c.b16 %v222, %v220
  %v275 = vpack.c.b16 %v223, %v221
  %v276 = vpack.c.b16 %v226, %v224
  %v277 = vpack.c.b16 %v227, %v225
  %v278 = vpack.c.b16 %v230, %v228
  %v279 = vpack.c.b16 %v231, %v229
  %v280 = vpack.c.b16 %v234, %v232
  %v281 = vpack.c.b16 %v235, %v233
  %v282 = vpack.c.b16 %v238, %v236
  %v283 = vpack.c.b16 %v239, %v237
  %v284 = vpack.c.b16 %v242, %v240
  %v285 = vpack.c.b16 %v243, %v241
  %v286 = vpack.c.b16 %v246, %v244
  %v287 = vpack.c.b16 %v247, %v245
  %v288 = vpack.c.b16 %v250, %v248
  %v289 = vpack.c.b16 %v251, %v249
  %v290 = vpack.c.b16 %v254, %v252
  %v291 = vpack.c.b16 %v255, %v253
  %v292 = vpack.c.b16 %v258, %v256
  %v293 = vpack.c.b16 %v259, %v257
  %v294 = vpack.c.b16 %v262, %v260
  %v295 = vpack.c.b16 %v263, %v261
  %328 = vmatprep.subr.bf16.mxu0 %v279
  %329 = vmatpush1.bf16.msra.mxu0 %v278
  %330 = vmatprep.subr.bf16.mxu0 %v277
  %331 = vmatpush1.bf16.msra.mxu0 %v276
  %332 = vmatprep.subr.bf16.mxu0 %v275
  %333 = vmatpush1.bf16.msra.mxu0 %v274
  %334 = vmatprep.subr.bf16.mxu0 %v273
  %335 = vmatpush1.bf16.msra.mxu0 %v272
  %336 = vmatprep.subr.bf16.mxu0 %v271
  %337 = vmatpush1.bf16.msra.mxu0 %v270
  %338 = vmatprep.subr.bf16.mxu0 %v269
  %339 = vmatpush1.bf16.msra.mxu0 %v268
  %340 = vmatprep.subr.bf16.mxu0 %v267
  %341 = vmatpush1.bf16.msra.mxu0 %v266
  %342 = vmatprep.subr.bf16.mxu0 %v265
  %343 = vmatpush1.bf16.msra.mxu0 %v264
  %344 = vmatprep.subr.bf16.mxu0 %v295
  %345 = vmatpush2.bf16.msra.mxu0 %v294
  %346 = vmatprep.subr.bf16.mxu0 %v293
  %347 = vmatpush2.bf16.msra.mxu0 %v292
  %348 = vmatprep.subr.bf16.mxu0 %v291
  %349 = vmatpush2.bf16.msra.mxu0 %v290
  %350 = vmatprep.subr.bf16.mxu0 %v289
  %351 = vmatpush2.bf16.msra.mxu0 %v288
  %352 = vmatprep.subr.bf16.mxu0 %v287
  %353 = vmatpush2.bf16.msra.mxu0 %v286
  %354 = vmatprep.subr.bf16.mxu0 %v285
  %355 = vmatpush2.bf16.msra.mxu0 %v284
  %356 = vmatprep.subr.bf16.mxu0 %v283
  %357 = vmatpush2.bf16.msra.mxu0 %v282
  %358 = vmatprep.subr.bf16.mxu0 %v281
  %359 = vmatpush2.bf16.msra.mxu0 %v280
  %360 = vmatprep.mubr.bf16.mxu0 %v123
  %361 = vmatmul.mubr.bf16.gmra.mxu0 %v122
  %v362 = vpop.f32.mrf.mxu0
  %v363 = vadd.f32 %v161, %v362
  %v364 = vpop.f32.mrf.mxu0
  %v365 = vadd.f32 %v165, %v364
  %v366 = vpop.f32.mrf.mxu0
  %v367 = vadd.f32 %v161, %v366
  %v368 = vpop.f32.mrf.mxu0
  %v369 = vadd.f32 %v165, %v368
  %370 = vdwg.mxu0
  %v371 = vmax.f32 %v363, 0.0
  %v372 = vmax.f32 %v365, 0.0
  %v373 = vmax.f32 %v367, 0.0
  %v374 = vmax.f32 %v369, 0.0
  %v375 = vpack.c.bf16 %v373, %v371
  %v376 = vpack.c.bf16 %v374, %v372
  %v377 = vld [vmem:[%s5] sm:$0xff]
  %v378 = vld [vmem:[%s5 + $0x8] sm:$0xff]
  %v379 = vld [vmem:[%s5 + $0x10] sm:$0xff]
  %v380 = vld [vmem:[%s5 + $0x18] sm:$0xff]
  %v381 = vld [vmem:[%s5 + $0x20] sm:$0xff]
  %v382 = vld [vmem:[%s5 + $0x28] sm:$0xff]
  %v383 = vld [vmem:[%s5 + $0x30] sm:$0xff]
  %v384 = vld [vmem:[%s5 + $0x38] sm:$0xff]
  %v385 = vld [vmem:[%s5 + $0x40] sm:$0xff]
  %v386 = vld [vmem:[%s5 + $0x48] sm:$0xff]
  %v387 = vld [vmem:[%s5 + $0x50] sm:$0xff]
  %v388 = vld [vmem:[%s5 + $0x58] sm:$0xff]
  %v389 = vld [vmem:[%s5 + $0x60] sm:$0xff]
  %v390 = vld [vmem:[%s5 + $0x68] sm:$0xff]
  %v391 = vld [vmem:[%s5 + $0x70] sm:$0xff]
  %v392 = vld [vmem:[%s5 + $0x78] sm:$0xff]
  %v393 = vld [vmem:[%s5 + $0x80] sm:$0xff]
  %v394 = vld [vmem:[%s5 + $0x88] sm:$0xff]
  %v395 = vld [vmem:[%s5 + $0x90] sm:$0xff]
  %v396 = vld [vmem:[%s5 + $0x98] sm:$0xff]
  %v397 = vld [vmem:[%s5 + $0xa0] sm:$0xff]
  %v398 = vld [vmem:[%s5 + $0xa8] sm:$0xff]
  %v399 = vld [vmem:[%s5 + $0xb0] sm:$0xff]
  %v400 = vld [vmem:[%s5 + $0xb8] sm:$0xff]
  %v401 = vld [vmem:[%s5 + $0xc0] sm:$0xff]
  %v402 = vld [vmem:[%s5 + $0xc8] sm:$0xff]
  %v403 = vld [vmem:[%s5 + $0xd0] sm:$0xff]
  %v404 = vld [vmem:[%s5 + $0xd8] sm:$0xff]
  %v405 = vld [vmem:[%s5 + $0xe0] sm:$0xff]
  %v406 = vld [vmem:[%s5 + $0xe8] sm:$0xff]
  %v407 = vld [vmem:[%s5 + $0xf0] sm:$0xff]
  %v408 = vld [vmem:[%s5 + $0xf8] sm:$0xff]
  %v409 = vld [vmem:[%s6] sm:$0x3]
  %v411 = vlaneseq
  %v412 = vshrl.u32 %v411, 7
  %v413 = vsub.s32 0, %v412
  %v414 = vrot.slane %v409, %v413
  %v415 = vlaneseq
  %v416 = vshrl.u32 %v415, 7
  %v417 = vsub.s32 1, %v416
  %v418 = vrot.slane %v409, %v417
  %v453 = vunpack.c.l.b16 %v377
  %v454 = vunpack.c.h.b16 %v377
  %v455 = vunpack.c.l.b16 %v378
  %v456 = vunpack.c.h.b16 %v378
  %v457 = vunpack.c.l.b16 %v379
  %v458 = vunpack.c.h.b16 %v379
  %v459 = vunpack.c.l.b16 %v380
  %v460 = vunpack.c.h.b16 %v380
  %v461 = vunpack.c.l.b16 %v381
  %v462 = vunpack.c.h.b16 %v381
  %v463 = vunpack.c.l.b16 %v382
  %v464 = vunpack.c.h.b16 %v382
  %v465 = vunpack.c.l.b16 %v383
  %v466 = vunpack.c.h.b16 %v383
  %v467 = vunpack.c.l.b16 %v384
  %v468 = vunpack.c.h.b16 %v384
  %v469 = vunpack.c.l.b16 %v385
  %v470 = vunpack.c.h.b16 %v385
  %v471 = vunpack.c.l.b16 %v386
  %v472 = vunpack.c.h.b16 %v386
  %v473 = vunpack.c.l.b16 %v387
  %v474 = vunpack.c.h.b16 %v387
  %v475 = vunpack.c.l.b16 %v388
  %v476 = vunpack.c.h.b16 %v388
  %v477 = vunpack.c.l.b16 %v389
  %v478 = vunpack.c.h.b16 %v389
  %v479 = vunpack.c.l.b16 %v390
  %v480 = vunpack.c.h.b16 %v390
  %v481 = vunpack.c.l.b16 %v391
  %v482 = vunpack.c.h.b16 %v391
  %v483 = vunpack.c.l.b16 %v392
  %v484 = vunpack.c.h.b16 %v392
  %v485 = vunpack.c.l.b16 %v393
  %v486 = vunpack.c.h.b16 %v393
  %v487 = vunpack.c.l.b16 %v394
  %v488 = vunpack.c.h.b16 %v394
  %v489 = vunpack.c.l.b16 %v395
  %v490 = vunpack.c.h.b16 %v395
  %v491 = vunpack.c.l.b16 %v396
  %v492 = vunpack.c.h.b16 %v396
  %v493 = vunpack.c.l.b16 %v397
  %v494 = vunpack.c.h.b16 %v397
  %v495 = vunpack.c.l.b16 %v398
  %v496 = vunpack.c.h.b16 %v398
  %v497 = vunpack.c.l.b16 %v399
  %v498 = vunpack.c.h.b16 %v399
  %v499 = vunpack.c.l.b16 %v400
  %v500 = vunpack.c.h.b16 %v400
  %v501 = vunpack.c.l.b16 %v401
  %v502 = vunpack.c.h.b16 %v401
  %v503 = vunpack.c.l.b16 %v402
  %v504 = vunpack.c.h.b16 %v402
  %v505 = vunpack.c.l.b16 %v403
  %v506 = vunpack.c.h.b16 %v403
  %v507 = vunpack.c.l.b16 %v404
  %v508 = vunpack.c.h.b16 %v404
  %v509 = vunpack.c.l.b16 %v405
  %v510 = vunpack.c.h.b16 %v405
  %v511 = vunpack.c.l.b16 %v406
  %v512 = vunpack.c.h.b16 %v406
  %v513 = vunpack.c.l.b16 %v407
  %v514 = vunpack.c.h.b16 %v407
  %v515 = vunpack.c.l.b16 %v408
  %v516 = vunpack.c.h.b16 %v408
  %v517 = vpack.c.b16 %v455, %v453
  %v518 = vpack.c.b16 %v456, %v454
  %v519 = vpack.c.b16 %v459, %v457
  %v520 = vpack.c.b16 %v460, %v458
  %v521 = vpack.c.b16 %v463, %v461
  %v522 = vpack.c.b16 %v464, %v462
  %v523 = vpack.c.b16 %v467, %v465
  %v524 = vpack.c.b16 %v468, %v466
  %v525 = vpack.c.b16 %v471, %v469
  %v526 = vpack.c.b16 %v472, %v470
  %v527 = vpack.c.b16 %v475, %v473
  %v528 = vpack.c.b16 %v476, %v474
  %v529 = vpack.c.b16 %v479, %v477
  %v530 = vpack.c.b16 %v480, %v478
  %v531 = vpack.c.b16 %v483, %v481
  %v532 = vpack.c.b16 %v484, %v482
  %v533 = vpack.c.b16 %v487, %v485
  %v534 = vpack.c.b16 %v488, %v486
  %v535 = vpack.c.b16 %v491, %v489
  %v536 = vpack.c.b16 %v492, %v490
  %v537 = vpack.c.b16 %v495, %v493
  %v538 = vpack.c.b16 %v496, %v494
  %v539 = vpack.c.b16 %v499, %v497
  %v540 = vpack.c.b16 %v500, %v498
  %v541 = vpack.c.b16 %v503, %v501
  %v542 = vpack.c.b16 %v504, %v502
  %v543 = vpack.c.b16 %v507, %v505
  %v544 = vpack.c.b16 %v508, %v506
  %v545 = vpack.c.b16 %v511, %v509
  %v546 = vpack.c.b16 %v512, %v510
  %v547 = vpack.c.b16 %v515, %v513
  %v548 = vpack.c.b16 %v516, %v514
  %581 = vmatprep.subr.bf16.mxu0 %v532
  %582 = vmatpush1.bf16.msra.mxu0 %v531
  %583 = vmatprep.subr.bf16.mxu0 %v530
  %584 = vmatpush1.bf16.msra.mxu0 %v529
  %585 = vmatprep.subr.bf16.mxu0 %v528
  %586 = vmatpush1.bf16.msra.mxu0 %v527
  %587 = vmatprep.subr.bf16.mxu0 %v526
  %588 = vmatpush1.bf16.msra.mxu0 %v525
  %589 = vmatprep.subr.bf16.mxu0 %v524
  %590 = vmatpush1.bf16.msra.mxu0 %v523
  %591 = vmatprep.subr.bf16.mxu0 %v522
  %592 = vmatpush1.bf16.msra.mxu0 %v521
  %593 = vmatprep.subr.bf16.mxu0 %v520
  %594 = vmatpush1.bf16.msra.mxu0 %v519
  %595 = vmatprep.subr.bf16.mxu0 %v518
  %596 = vmatpush1.bf16.msra.mxu0 %v517
  %597 = vmatprep.subr.bf16.mxu0 %v548
  %598 = vmatpush2.bf16.msra.mxu0 %v547
  %599 = vmatprep.subr.bf16.mxu0 %v546
  %600 = vmatpush2.bf16.msra.mxu0 %v545
  %601 = vmatprep.subr.bf16.mxu0 %v544
  %602 = vmatpush2.bf16.msra.mxu0 %v543
  %603 = vmatprep.subr.bf16.mxu0 %v542
  %604 = vmatpush2.bf16.msra.mxu0 %v541
  %605 = vmatprep.subr.bf16.mxu0 %v540
  %606 = vmatpush2.bf16.msra.mxu0 %v539
  %607 = vmatprep.subr.bf16.mxu0 %v538
  %608 = vmatpush2.bf16.msra.mxu0 %v537
  %609 = vmatprep.subr.bf16.mxu0 %v536
  %610 = vmatpush2.bf16.msra.mxu0 %v535
  %611 = vmatprep.subr.bf16.mxu0 %v534
  %612 = vmatpush2.bf16.msra.mxu0 %v533
  %613 = vmatprep.mubr.bf16.mxu0 %v376
  %614 = vmatmul.mubr.bf16.gmra.mxu0 %v375
  %v615 = vpop.f32.mrf.mxu0
  %v616 = vadd.f32 %v414, %v615
  %v617 = vpop.f32.mrf.mxu0
  %v618 = vadd.f32 %v418, %v617
  %v619 = vpop.f32.mrf.mxu0
  %v620 = vadd.f32 %v414, %v619
  %v621 = vpop.f32.mrf.mxu0
  %v622 = vadd.f32 %v418, %v621
  %623 = vdwg.mxu0
  %v624 = vmax.f32 %v616, 0.0
  %v625 = vmax.f32 %v618, 0.0
  %v626 = vmax.f32 %v620, 0.0
  %v627 = vmax.f32 %v622, 0.0
  %v628 = vpack.c.bf16 %v626, %v624
  %v629 = vpack.c.bf16 %v627, %v625
  %v630 = vld [vmem:[%s7] sm:$0xf]
  %v631 = vld [vmem:[%s7 + $0x4] sm:$0xf]
  %v632 = vld [vmem:[%s7 + $0x8] sm:$0xf]
  %v633 = vld [vmem:[%s7 + $0xc] sm:$0xf]
  %v634 = vld [vmem:[%s7 + $0x10] sm:$0xf]
  %v635 = vld [vmem:[%s7 + $0x14] sm:$0xf]
  %v636 = vld [vmem:[%s7 + $0x18] sm:$0xf]
  %v637 = vld [vmem:[%s7 + $0x1c] sm:$0xf]
  %v638 = vld [vmem:[%s7 + $0x20] sm:$0xf]
  %v639 = vld [vmem:[%s7 + $0x24] sm:$0xf]
  %v640 = vld [vmem:[%s7 + $0x28] sm:$0xf]
  %v641 = vld [vmem:[%s7 + $0x2c] sm:$0xf]
  %v642 = vld [vmem:[%s7 + $0x30] sm:$0xf]
  %v643 = vld [vmem:[%s7 + $0x34] sm:$0xf]
  %v644 = vld [vmem:[%s7 + $0x38] sm:$0xf]
  %v645 = vld [vmem:[%s7 + $0x3c] sm:$0xf]
  %v646 = vld [vmem:[%s7 + $0x40] sm:$0xf]
  %v647 = vld [vmem:[%s7 + $0x44] sm:$0xf]
  %v648 = vld [vmem:[%s7 + $0x48] sm:$0xf]
  %v649 = vld [vmem:[%s7 + $0x4c] sm:$0xf]
  %v650 = vld [vmem:[%s7 + $0x50] sm:$0xf]
  %v651 = vld [vmem:[%s7 + $0x54] sm:$0xf]
  %v652 = vld [vmem:[%s7 + $0x58] sm:$0xf]
  %v653 = vld [vmem:[%s7 + $0x5c] sm:$0xf]
  %v654 = vld [vmem:[%s7 + $0x60] sm:$0xf]
  %v655 = vld [vmem:[%s7 + $0x64] sm:$0xf]
  %v656 = vld [vmem:[%s7 + $0x68] sm:$0xf]
  %v657 = vld [vmem:[%s7 + $0x6c] sm:$0xf]
  %v658 = vld [vmem:[%s7 + $0x70] sm:$0xf]
  %v659 = vld [vmem:[%s7 + $0x74] sm:$0xf]
  %v660 = vld [vmem:[%s7 + $0x78] sm:$0xf]
  %v661 = vld [vmem:[%s7 + $0x7c] sm:$0xf]
  %v662 = vld [vmem:[%s8] sm:$0x1]
  %v664 = vlaneseq
  %v665 = vshrl.u32 %v664, 7
  %v666 = vsub.s32 0, %v665
  %v667 = vrot.slane %v662, %v666
  %v701 = vunpack.c.l.b16 %v630
  %v702 = vunpack.c.l.b16 %v631
  %v703 = vunpack.c.l.b16 %v632
  %v704 = vunpack.c.l.b16 %v633
  %v705 = vunpack.c.l.b16 %v634
  %v706 = vunpack.c.l.b16 %v635
  %v707 = vunpack.c.l.b16 %v636
  %v708 = vunpack.c.l.b16 %v637
  %v709 = vunpack.c.l.b16 %v638
  %v710 = vunpack.c.l.b16 %v639
  %v711 = vunpack.c.l.b16 %v640
  %v712 = vunpack.c.l.b16 %v641
  %v713 = vunpack.c.l.b16 %v642
  %v714 = vunpack.c.l.b16 %v643
  %v715 = vunpack.c.l.b16 %v644
  %v716 = vunpack.c.l.b16 %v645
  %v717 = vunpack.c.l.b16 %v646
  %v718 = vunpack.c.l.b16 %v647
  %v719 = vunpack.c.l.b16 %v648
  %v720 = vunpack.c.l.b16 %v649
  %v721 = vunpack.c.l.b16 %v650
  %v722 = vunpack.c.l.b16 %v651
  %v723 = vunpack.c.l.b16 %v652
  %v724 = vunpack.c.l.b16 %v653
  %v725 = vunpack.c.l.b16 %v654
  %v726 = vunpack.c.l.b16 %v655
  %v727 = vunpack.c.l.b16 %v656
  %v728 = vunpack.c.l.b16 %v657
  %v729 = vunpack.c.l.b16 %v658
  %v730 = vunpack.c.l.b16 %v659
  %v731 = vunpack.c.l.b16 %v660
  %v732 = vunpack.c.l.b16 %v661
  %v733 = vpack.c.b16 %v702, %v701
  %v734 = vpack.c.b16 %v704, %v703
  %v735 = vpack.c.b16 %v706, %v705
  %v736 = vpack.c.b16 %v708, %v707
  %v737 = vpack.c.b16 %v710, %v709
  %v738 = vpack.c.b16 %v712, %v711
  %v739 = vpack.c.b16 %v714, %v713
  %v740 = vpack.c.b16 %v716, %v715
  %v741 = vpack.c.b16 %v718, %v717
  %v742 = vpack.c.b16 %v720, %v719
  %v743 = vpack.c.b16 %v722, %v721
  %v744 = vpack.c.b16 %v724, %v723
  %v745 = vpack.c.b16 %v726, %v725
  %v746 = vpack.c.b16 %v728, %v727
  %v747 = vpack.c.b16 %v730, %v729
  %v748 = vpack.c.b16 %v732, %v731
  %765 = vmatprep.subr.bf16.mxu0 0
  %766 = vmatpush1.bf16.msra.mxu0 %v740
  %767 = vmatprep.subr.bf16.mxu0 0
  %768 = vmatpush1.bf16.msra.mxu0 %v739
  %769 = vmatprep.subr.bf16.mxu0 0
  %770 = vmatpush1.bf16.msra.mxu0 %v738
  %771 = vmatprep.subr.bf16.mxu0 0
  %772 = vmatpush1.bf16.msra.mxu0 %v737
  %773 = vmatprep.subr.bf16.mxu0 0
  %774 = vmatpush1.bf16.msra.mxu0 %v736
  %775 = vmatprep.subr.bf16.mxu0 0
  %776 = vmatpush1.bf16.msra.mxu0 %v735
  %777 = vmatprep.subr.bf16.mxu0 0
  %778 = vmatpush1.bf16.msra.mxu0 %v734
  %779 = vmatprep.subr.bf16.mxu0 0
  %780 = vmatpush1.bf16.msra.mxu0 %v733
  %781 = vmatprep.subr.bf16.mxu0 0
  %782 = vmatpush2.bf16.msra.mxu0 %v748
  %783 = vmatprep.subr.bf16.mxu0 0
  %784 = vmatpush2.bf16.msra.mxu0 %v747
  %785 = vmatprep.subr.bf16.mxu0 0
  %786 = vmatpush2.bf16.msra.mxu0 %v746
  %787 = vmatprep.subr.bf16.mxu0 0
  %788 = vmatpush2.bf16.msra.mxu0 %v745
  %789 = vmatprep.subr.bf16.mxu0 0
  %790 = vmatpush2.bf16.msra.mxu0 %v744
  %791 = vmatprep.subr.bf16.mxu0 0
  %792 = vmatpush2.bf16.msra.mxu0 %v743
  %793 = vmatprep.subr.bf16.mxu0 0
  %794 = vmatpush2.bf16.msra.mxu0 %v742
  %795 = vmatprep.subr.bf16.mxu0 0
  %796 = vmatpush2.bf16.msra.mxu0 %v741
  %797 = vmatprep.mubr.bf16.mxu0 %v629
  %798 = vmatmul.mubr.bf16.gmra.mxu0 %v628
  %v799 = vpop.f32.mrf.mxu0
  %v800 = vadd.f32 %v667, %v799
  %v801 = vpop.f32.mrf.mxu0
  %v802 = vpop.f32.mrf.mxu0
  %v803 = vadd.f32 %v667, %v802
  %v804 = vpop.f32.mrf.mxu0
  %805 = vdwg.mxu0
  %806 = vst [vmem:[%s13] sm:$0xff] %v800
  %807 = vst [vmem:[%s13 + $0x8] sm:$0xff] %v803
  %v808 = vpack.c.bf16 %v803, %v800
  %v809 = vld [vmem:[%s9] sm:$0xf]
  %v810 = vld [vmem:[%s9 + $0x4] sm:$0xf]
  %v811 = vld [vmem:[%s9 + $0x8] sm:$0xf]
  %v812 = vld [vmem:[%s9 + $0xc] sm:$0xf]
  %v813 = vld [vmem:[%s9 + $0x10] sm:$0xf]
  %v814 = vld [vmem:[%s9 + $0x14] sm:$0xf]
  %v815 = vld [vmem:[%s9 + $0x18] sm:$0xf]
  %v816 = vld [vmem:[%s9 + $0x1c] sm:$0xf]
  %v817 = vld [vmem:[%s9 + $0x20] sm:$0xf]
  %v818 = vld [vmem:[%s9 + $0x24] sm:$0xf]
  %v819 = vld [vmem:[%s9 + $0x28] sm:$0xf]
  %v820 = vld [vmem:[%s9 + $0x2c] sm:$0xf]
  %v821 = vld [vmem:[%s9 + $0x30] sm:$0xf]
  %v822 = vld [vmem:[%s9 + $0x34] sm:$0xf]
  %v823 = vld [vmem:[%s9 + $0x38] sm:$0xf]
  %v824 = vld [vmem:[%s9 + $0x3c] sm:$0xf]
  %v825 = vld [vmem:[%s10] sm:$0x1]
  %v827 = vlaneseq
  %v828 = vshrl.u32 %v827, 7
  %v829 = vsub.s32 0, %v828
  %v830 = vrot.slane %v825, %v829
  %v848 = vunpack.c.l.b16 %v809
  %v849 = vunpack.c.l.b16 %v810
  %v850 = vunpack.c.l.b16 %v811
  %v851 = vunpack.c.l.b16 %v812
  %v852 = vunpack.c.l.b16 %v813
  %v853 = vunpack.c.l.b16 %v814
  %v854 = vunpack.c.l.b16 %v815
  %v855 = vunpack.c.l.b16 %v816
  %v856 = vunpack.c.l.b16 %v817
  %v857 = vunpack.c.l.b16 %v818
  %v858 = vunpack.c.l.b16 %v819
  %v859 = vunpack.c.l.b16 %v820
  %v860 = vunpack.c.l.b16 %v821
  %v861 = vunpack.c.l.b16 %v822
  %v862 = vunpack.c.l.b16 %v823
  %v863 = vunpack.c.l.b16 %v824
  %v864 = vpack.c.b16 %v849, %v848
  %v865 = vpack.c.b16 %v851, %v850
  %v866 = vpack.c.b16 %v853, %v852
  %v867 = vpack.c.b16 %v855, %v854
  %v868 = vpack.c.b16 %v857, %v856
  %v869 = vpack.c.b16 %v859, %v858
  %v870 = vpack.c.b16 %v861, %v860
  %v871 = vpack.c.b16 %v863, %v862
  %880 = vmatprep.subr.bf16.mxu0 0
  %881 = vmatpush1.bf16.msra.mxu0 %v871
  %882 = vmatprep.subr.bf16.mxu0 0
  %883 = vmatpush1.bf16.msra.mxu0 %v870
  %884 = vmatprep.subr.bf16.mxu0 0
  %885 = vmatpush1.bf16.msra.mxu0 %v869
  %886 = vmatprep.subr.bf16.mxu0 0
  %887 = vmatpush1.bf16.msra.mxu0 %v868
  %888 = vmatprep.subr.bf16.mxu0 0
  %889 = vmatpush1.bf16.msra.mxu0 %v867
  %890 = vmatprep.subr.bf16.mxu0 0
  %891 = vmatpush1.bf16.msra.mxu0 %v866
  %892 = vmatprep.subr.bf16.mxu0 0
  %893 = vmatpush1.bf16.msra.mxu0 %v865
  %894 = vmatprep.subr.bf16.mxu0 0
  %895 = vmatpush1.bf16.msra.mxu0 %v864
  %896 = vmatprep.subr.bf16.mxu0 0
  %897 = vmatpush2.bf16.msra.mxu0 0
  %898 = vmatprep.subr.bf16.mxu0 0
  %899 = vmatpush2.bf16.msra.mxu0 0
  %900 = vmatprep.subr.bf16.mxu0 0
  %901 = vmatpush2.bf16.msra.mxu0 0
  %902 = vmatprep.subr.bf16.mxu0 0
  %903 = vmatpush2.bf16.msra.mxu0 0
  %904 = vmatprep.subr.bf16.mxu0 0
  %905 = vmatpush2.bf16.msra.mxu0 0
  %906 = vmatprep.subr.bf16.mxu0 0
  %907 = vmatpush2.bf16.msra.mxu0 0
  %908 = vmatprep.subr.bf16.mxu0 0
  %909 = vmatpush2.bf16.msra.mxu0 0
  %910 = vmatprep.subr.bf16.mxu0 0
  %911 = vmatpush2.bf16.msra.mxu0 0
  %912 = vmatprep.mubr.bf16.mxu0 0
  %913 = vmatmul.mubr.bf16.gmra.mxu0 %v808
  %v914 = vpop.f32.mrf.mxu0
  %v915 = vadd.f32 %v830, %v914
  %v916 = vpop.f32.mrf.mxu0
  %v917 = vpop.f32.mrf.mxu0
  %v918 = vadd.f32 %v830, %v917
  %v919 = vpop.f32.mrf.mxu0
  %920 = vdwg.mxu0
  %v921 = vmax.f32 %v915, 0.0
  %v922 = vmax.f32 %v918, 0.0
  %v923 = vpack.c.bf16 %v922, %v921
  %v924 = vld [vmem:[%s11] sm:$0xf]
  %v925 = vld [vmem:[%s11 + $0x4] sm:$0xf]
  %v926 = vld [vmem:[%s11 + $0x8] sm:$0xf]
  %v927 = vld [vmem:[%s11 + $0xc] sm:$0xf]
  %v928 = vld [vmem:[%s11 + $0x10] sm:$0xf]
  %v929 = vld [vmem:[%s11 + $0x14] sm:$0xf]
  %v930 = vld [vmem:[%s11 + $0x18] sm:$0xf]
  %v931 = vld [vmem:[%s11 + $0x1c] sm:$0xf]
  %v932 = vld [vmem:[%s11 + $0x20] sm:$0xf]
  %v933 = vld [vmem:[%s11 + $0x24] sm:$0xf]
  %v934 = vld [vmem:[%s11 + $0x28] sm:$0xf]
  %v935 = vld [vmem:[%s11 + $0x2c] sm:$0xf]
  %v936 = vld [vmem:[%s11 + $0x30] sm:$0xf]
  %v937 = vld [vmem:[%s11 + $0x34] sm:$0xf]
  %v938 = vld [vmem:[%s11 + $0x38] sm:$0xf]
  %v939 = vld [vmem:[%s11 + $0x3c] sm:$0xf]
  %v940 = vld [vmem:[%s12] sm:$0x1]
  %v942 = vlaneseq
  %v943 = vshrl.u32 %v942, 7
  %v944 = vsub.s32 0, %v943
  %v945 = vrot.slane %v940, %v944
  %v963 = vunpack.c.l.b16 %v924
  %v964 = vunpack.c.l.b16 %v925
  %v965 = vunpack.c.l.b16 %v926
  %v966 = vunpack.c.l.b16 %v927
  %v967 = vunpack.c.l.b16 %v928
  %v968 = vunpack.c.l.b16 %v929
  %v969 = vunpack.c.l.b16 %v930
  %v970 = vunpack.c.l.b16 %v931
  %v971 = vunpack.c.l.b16 %v932
  %v972 = vunpack.c.l.b16 %v933
  %v973 = vunpack.c.l.b16 %v934
  %v974 = vunpack.c.l.b16 %v935
  %v975 = vunpack.c.l.b16 %v936
  %v976 = vunpack.c.l.b16 %v937
  %v977 = vunpack.c.l.b16 %v938
  %v978 = vunpack.c.l.b16 %v939
  %v979 = vpack.c.b16 %v964, %v963
  %v980 = vpack.c.b16 %v966, %v965
  %v981 = vpack.c.b16 %v968, %v967
  %v982 = vpack.c.b16 %v970, %v969
  %v983 = vpack.c.b16 %v972, %v971
  %v984 = vpack.c.b16 %v974, %v973
  %v985 = vpack.c.b16 %v976, %v975
  %v986 = vpack.c.b16 %v978, %v977
  %995 = vmatprep.subr.bf16.mxu0 0
  %996 = vmatpush1.bf16.msra.mxu0 %v986
  %997 = vmatprep.subr.bf16.mxu0 0
  %998 = vmatpush1.bf16.msra.mxu0 %v985
  %999 = vmatprep.subr.bf16.mxu0 0
  %1000 = vmatpush1.bf16.msra.mxu0 %v984
  %1001 = vmatprep.subr.bf16.mxu0 0
  %1002 = vmatpush1.bf16.msra.mxu0 %v983
  %1003 = vmatprep.subr.bf16.mxu0 0
  %1004 = vmatpush1.bf16.msra.mxu0 %v982
  %1005 = vmatprep.subr.bf16.mxu0 0
  %1006 = vmatpush1.bf16.msra.mxu0 %v981
  %1007 = vmatprep.subr.bf16.mxu0 0
  %1008 = vmatpush1.bf16.msra.mxu0 %v980
  %1009 = vmatprep.subr.bf16.mxu0 0
  %1010 = vmatpush1.bf16.msra.mxu0 %v979
  %1011 = vmatprep.subr.bf16.mxu0 0
  %1012 = vmatpush2.bf16.msra.mxu0 0
  %1013 = vmatprep.subr.bf16.mxu0 0
  %1014 = vmatpush2.bf16.msra.mxu0 0
  %1015 = vmatprep.subr.bf16.mxu0 0
  %1016 = vmatpush2.bf16.msra.mxu0 0
  %1017 = vmatprep.subr.bf16.mxu0 0
  %1018 = vmatpush2.bf16.msra.mxu0 0
  %1019 = vmatprep.subr.bf16.mxu0 0
  %1020 = vmatpush2.bf16.msra.mxu0 0
  %1021 = vmatprep.subr.bf16.mxu0 0
  %1022 = vmatpush2.bf16.msra.mxu0 0
  %1023 = vmatprep.subr.bf16.mxu0 0
  %1024 = vmatpush2.bf16.msra.mxu0 0
  %1025 = vmatprep.subr.bf16.mxu0 0
  %1026 = vmatpush2.bf16.msra.mxu0 0
  %1027 = vmatprep.mubr.bf16.mxu0 0
  %1028 = vmatmul.mubr.bf16.gmra.mxu0 %v923
  %v1029 = vpop.f32.mrf.mxu0
  %v1030 = vadd.f32 %v945, %v1029
  %v1031 = vpop.f32.mrf.mxu0
  %v1032 = vpop.f32.mrf.mxu0
  %v1033 = vadd.f32 %v945, %v1032
  %v1034 = vpop.f32.mrf.mxu0
  %1035 = vdwg.mxu0
  %1036 = vst [vmem:[%s14] sm:$0xff] %v1030
  %1037 = vst [vmem:[%s14 + $0x8] sm:$0xff] %v1033
  // Predicated region
  $region54: #{siamese_forward.1} parent=0 // pred_check
    _
  $region55: #{siamese_forward.1} parent=0 // pred_check_branch
    %1039 = sbr.rel (0) target = $region57
  $region56: #{siamese_forward.1} parent=0 // pred_region
    _
  $region57: #{siamese_forward.1} parent=0 // pred_fallthru
    _
  // Predicated region
  $region58: #{siamese_forward.1} parent=0 // pred_check
    _
  $region59: #{siamese_forward.1} parent=0 // pred_check_branch
    %1041 = sbr.rel (0) target = $region61
  $region60: #{siamese_forward.1} parent=0 // pred_region
    _
  $region61: #{siamese_forward.1} parent=0 // pred_fallthru
    _
  // Predicated region
  $region62: #{siamese_forward.1} parent=0 // pred_check
    _
  $region63: #{siamese_forward.1} parent=0 // pred_check_branch
    %1043 = sbr.rel (0) target = $region65
  $region64: #{siamese_forward.1} parent=0 // pred_region
    _
  $region65: #{siamese_forward.1} parent=0 // pred_fallthru
    _
  // Predicated region
  $region66: #{siamese_forward.1} parent=0 // pred_check
    _
  $region67: #{siamese_forward.1} parent=0 // pred_check_branch
    %1045 = sbr.rel (0) target = $region69
  $region68: #{siamese_forward.1} parent=0 // pred_region
    _
  $region69: #{siamese_forward.1} parent=0 // pred_fallthru
    _

</llo_original>
